<compile_context>
chip_gen: v7x
topology: tpu7x:2x2x1
jax: 0.10.0
libtpu: 0.0.40
codegen_flags: <defaults>
</compile_context>

<pallas_src>
import jax
import jax.numpy as jnp
from jax.experimental import pallas as pl
from jax.experimental.pallas import tpu as pltpu

_LANES = 128      # vreg lane width
_TILE_ROWS = 2048  # (2048, 128) f32 = 1 MiB per input tile


def _round_up(x, m):
    return (x + m - 1) // m * m


def _bce_kernel(logits_ref, targets_ref, out_ref):
    """One grid step: per-lane partial BCE sums for one (tile_rows, 128) tile."""
    x = logits_ref[...].astype(jnp.float32)
    t = targets_ref[...].astype(jnp.float32)

    # softplus(x) = max(x, 0) + log(1 + exp(-|x|))   (2 transcendentals, EUP)
    sp = jnp.maximum(x, 0.0) + jnp.log(1.0 + jnp.exp(-jnp.abs(x)))
    log_p = jnp.maximum(x - sp, -100.0)    # log(sigmoid(x)), clamped like torch
    log_1mp = jnp.maximum(-sp, -100.0)     # log(1 - sigmoid(x)), clamped

    loss = -(t * log_p + (1.0 - t) * log_1mp)

    # Per-lane partial sums (mostly VPU adds across vregs); cross-lane reduce
    # and the divide by n are deferred to the wrapper.
    out_ref[...] = jnp.sum(loss, axis=0, keepdims=True)[None]


@jax.jit
def bce_loss_2d(logits, targets):
    """Equivalent of BCELoss2d().forward(logits, targets) -> scalar f32."""
    assert logits.shape == targets.shape
    n = logits.size

    rows = pl.cdiv(n, _LANES)
    tile_rows = min(_TILE_ROWS, _round_up(rows, 8))
    padded_rows = _round_up(rows, tile_rows)
    num_tiles = padded_rows // tile_rows
    pad = padded_rows * _LANES - n

    lf = logits.reshape(-1)
    tf = targets.reshape(-1)
    if pad:
        # Pad so padded elements contribute exactly zero loss:
        #   x = 1e4, t = 1  ->  -(1 * log(sigmoid(1e4))) == 0 exactly in f32.
        lf = jnp.pad(lf, (0, pad), constant_values=1e4)
        tf = jnp.pad(tf, (0, pad), constant_values=1.0)
    lf = lf.reshape(padded_rows, _LANES)
    tf = tf.reshape(padded_rows, _LANES)

    partials = pl.pallas_call(
        _bce_kernel,
        out_shape=jax.ShapeDtypeStruct((num_tiles, 1, _LANES), jnp.float32),
        grid=(num_tiles,),
        in_specs=[
            pl.BlockSpec((tile_rows, _LANES), lambda i: (i, 0)),
            pl.BlockSpec((tile_rows, _LANES), lambda i: (i, 0)),
        ],
        out_specs=pl.BlockSpec((1, 1, _LANES), lambda i: (i, 0, 0)),
        compiler_params=pltpu.CompilerParams(
            dimension_semantics=("parallel",),
        ),
    )(lf, tf)

    return jnp.sum(partials) / jnp.float32(n)


def _reference(logits, targets):
    """Pure-JAX reference matching torch.nn.BCELoss on sigmoid(logits)."""
    p = jax.nn.sigmoid(logits.astype(jnp.float32)).reshape(-1)
    t = targets.astype(jnp.float32).reshape(-1)
    log_p = jnp.maximum(jnp.log(p), -100.0)
    log_1mp = jnp.maximum(jnp.log(1.0 - p), -100.0)
    return jnp.mean(-(t * log_p + (1.0 - t) * log_1mp))


if __name__ == "__main__":
    key = jax.random.PRNGKey(0)
    k1, k2 = jax.random.split(key)

    # NCHW, as the PyTorch module would receive from a segmentation net.
    logits = jax.random.normal(k1, (2, 4, 16, 16), dtype=jnp.float32) * 3.0
    targets = (jax.random.uniform(k2, (2, 4, 16, 16)) > 0.5).astype(jnp.float32)

    loss = bce_loss_2d(logits, targets)
    jax.block_until_ready(loss)
    ref = _reference(logits, targets)
    assert jnp.allclose(loss, ref, rtol=1e-4, atol=1e-4), (loss, ref)

    # Ragged size -> exercises the zero-contribution padding path.
    k3, k4 = jax.random.split(k1)
    logits2 = jax.random.normal(k3, (2, 3, 17, 19), dtype=jnp.float32) * 3.0
    targets2 = (jax.random.uniform(k4, (2, 3, 17, 19)) > 0.5).astype(jnp.float32)
    loss2 = bce_loss_2d(logits2, targets2)
    jax.block_until_ready(loss2)
    ref2 = _reference(logits2, targets2)
    assert jnp.allclose(loss2, ref2, rtol=1e-4, atol=1e-4), (loss2, ref2)

    print("KERNEL_OK")
</pallas_src>

<mosaic_0001>
module attributes {stable_mosaic.version = 11 : i64} {
  func.func @_bce_kernel(%arg0: i32, %arg1: memref<16x128xf32, #tpu.memory_space<vmem>>, %arg2: memref<16x128xf32, #tpu.memory_space<vmem>>, %arg3: memref<1x1x128xf32, #tpu.memory_space<vmem>>) attributes {dimension_semantics = [#tpu.dimension_semantics<parallel>], iteration_bounds = array<i64: 1>, scalar_prefetch = 0 : i64, scratch_operands = 0 : i64, tpu.core_type = #tpu.core_type<tc>, window_params = [{transform_indices = @transform_0, window_bounds = array<i64: 16, 128>}, {transform_indices = @transform_1, window_bounds = array<i64: 16, 128>}, {transform_indices = @transform_2, window_bounds = array<i64: 1, 1, 128>}]} {
    %c0 = arith.constant 0 : index
    %c0_0 = arith.constant 0 : index
    %0 = vector.load %arg1[%c0, %c0_0] : memref<16x128xf32, #tpu.memory_space<vmem>>, vector<16x128xf32>
    %c0_1 = arith.constant 0 : index
    %c0_2 = arith.constant 0 : index
    %1 = vector.load %arg2[%c0_1, %c0_2] : memref<16x128xf32, #tpu.memory_space<vmem>>, vector<16x128xf32>
    %cst = arith.constant 0.000000e+00 : f32
    %2 = vector.broadcast %cst : f32 to vector<16x128xf32>
    %3 = arith.maximumf %0, %2 : vector<16x128xf32>
    %4 = math.absf %0 : vector<16x128xf32>
    %cst_3 = arith.constant 0.000000e+00 : f32
    %5 = vector.broadcast %cst_3 : f32 to vector<16x128xf32>
    %6 = arith.subf %5, %4 : vector<16x128xf32>
    %7 = math.exp %6 : vector<16x128xf32>
    %cst_4 = arith.constant 1.000000e+00 : f32
    %8 = vector.broadcast %cst_4 : f32 to vector<16x128xf32>
    %9 = arith.addf %8, %7 : vector<16x128xf32>
    %10 = math.log %9 : vector<16x128xf32>
    %11 = arith.addf %3, %10 : vector<16x128xf32>
    %12 = arith.subf %0, %11 : vector<16x128xf32>
    %cst_5 = arith.constant -1.000000e+02 : f32
    %13 = vector.broadcast %cst_5 : f32 to vector<16x128xf32>
    %14 = arith.maximumf %12, %13 : vector<16x128xf32>
    %cst_6 = arith.constant 0.000000e+00 : f32
    %15 = vector.broadcast %cst_6 : f32 to vector<16x128xf32>
    %16 = arith.subf %15, %11 : vector<16x128xf32>
    %cst_7 = arith.constant -1.000000e+02 : f32
    %17 = vector.broadcast %cst_7 : f32 to vector<16x128xf32>
    %18 = arith.maximumf %16, %17 : vector<16x128xf32>
    %19 = arith.mulf %1, %14 : vector<16x128xf32>
    %cst_8 = arith.constant 1.000000e+00 : f32
    %20 = vector.broadcast %cst_8 : f32 to vector<16x128xf32>
    %21 = arith.subf %20, %1 : vector<16x128xf32>
    %22 = arith.mulf %21, %18 : vector<16x128xf32>
    %23 = arith.addf %19, %22 : vector<16x128xf32>
    %cst_9 = arith.constant 0.000000e+00 : f32
    %24 = vector.broadcast %cst_9 : f32 to vector<16x128xf32>
    %25 = arith.subf %24, %23 : vector<16x128xf32>
    %cst_10 = arith.constant dense<0.000000e+00> : vector<128xf32>
    %26 = vector.multi_reduction <add>, %25, %cst_10 [0] : vector<16x128xf32> to vector<128xf32>
    %27 = vector.shape_cast %26 : vector<128xf32> to vector<1x128xf32>
    %28 = vector.shape_cast %27 : vector<1x128xf32> to vector<1x1x128xf32>
    %c0_11 = arith.constant 0 : index
    %c0_12 = arith.constant 0 : index
    %c0_13 = arith.constant 0 : index
    %29 = vector.load %arg3[%c0_11, %c0_12, %c0_13] : memref<1x1x128xf32, #tpu.memory_space<vmem>>, vector<1x1x128xf32>
    tpu.vector_store %arg3[%c0_11, %c0_12, %c0_13], %28 {strides = array<i32>} : memref<1x1x128xf32, #tpu.memory_space<vmem>>, vector<1x1x128xf32>,
    return
  }
  func.func @transform_0(%arg0: i32) -> (i32, i32) {
    %c0_i32 = arith.constant 0 : i32
    %c0_i32_0 = arith.constant 0 : i32
    return %arg0, %c0_i32 : i32, i32
  }
  func.func @transform_1(%arg0: i32) -> (i32, i32) {
    %c0_i32 = arith.constant 0 : i32
    %c0_i32_0 = arith.constant 0 : i32
    return %arg0, %c0_i32 : i32, i32
  }
  func.func @transform_2(%arg0: i32) -> (i32, i32, i32) {
    %c0_i32 = arith.constant 0 : i32
    %c0_i32_0 = arith.constant 0 : i32
    %c0_i32_1 = arith.constant 0 : i32
    return %arg0, %c0_i32, %c0_i32_0 : i32, i32, i32
  }
}

</mosaic_0001>

<llo_original>
// kernel: bce_loss_2d.1
$region0: #{bce_loss_2d.1}
  #allocation0 [shape = 'u32[]', space=smem, size = 0x4, offset = 0x4, fixed_abs, tag = 'smem constant byte address 0x4 - core index']
  #allocation1 [shape = 'u32[144,128]{1,0:T(1,128)}', space=vmem, size = 0x12000, scoped, tag = 'internal scratch']
  %s0 = inlined_call_operand.vmem [shape: f32[16,128], index: 0, kind: input, shape index: {}]
  %s1 = inlined_call_operand.vmem [shape: f32[16,128], index: 1, kind: input, shape index: {}]
  %s2 = inlined_call_operand.vmem [shape: f32[1,1,128], index: 2, kind: output, shape index: {}]
  %s3 = sld [smem:[#allocation0]]
  $region18: #{bce_loss_2d.1} parent=0
    _
  %s5 = ssub.s32 1, %s3
  %s6 = scalar_select 0, %s5, %s3
  // Predicated region
  $region2: #{bce_loss_2d.1} parent=0 // pred_check
    _
  $region3: #{bce_loss_2d.1} parent=0 // pred_check_branch
    %8 = sbr.rel (0) target = $region5
  $region4: #{bce_loss_2d.1} parent=0 // pred_region
    _
  $region5: #{bce_loss_2d.1} parent=0 // pred_fallthru
    _
  // Predicated region
  $region6: #{bce_loss_2d.1} parent=0 // pred_check
    _
  $region7: #{bce_loss_2d.1} parent=0 // pred_check_branch
    %10 = sbr.rel (0) target = $region9
  $region8: #{bce_loss_2d.1} parent=0 // pred_region
    _
  $region9: #{bce_loss_2d.1} parent=0 // pred_fallthru
    _
  %v11 = vld [vmem:[%s0] sm:$0xff]
  %v12 = vld [vmem:[%s0 + $0x8] sm:$0xff]
  %v13 = vld [vmem:[%s1] sm:$0xff]
  %v14 = vld [vmem:[%s1 + $0x8] sm:$0xff]
  %v15 = vmax.f32 %v11, 0.0
  %v16 = vmax.f32 %v12, 0.0
  %v17 = vand.u32 2147483647, %v11
  %v18 = vand.u32 2147483647, %v12
  %v19 = vsub.f32 0.0, %v17
  %v20 = vsub.f32 0.0, %v18
  %v21 = vmul.f32 %v19, 1.442695
  %v22 = vpow.pop %v21
  %v23 = vmul.f32 %v20, 1.442695
  %v24 = vpow.pop %v23
  %v25 = vadd.f32 %v22, 1.0
  %v26 = vadd.f32 %v24, 1.0
  %v27 = vlog2.pop %v25
  %v28 = vmul.f32 %v27, 0.6931472
  %v29 = vlog2.pop %v26
  %v30 = vmul.f32 %v29, 0.6931472
  %v31 = vadd.f32 %v15, %v28
  %v32 = vadd.f32 %v16, %v30
  %v33 = vsub.f32 %v11, %v31
  %v34 = vsub.f32 %v12, %v32
  %v35 = vmax.f32 %v33, -100.0
  %v36 = vmax.f32 %v34, -100.0
  %v37 = vsub.f32 0.0, %v31
  %v38 = vsub.f32 0.0, %v32
  %v39 = vmax.f32 %v37, -100.0
  %v40 = vmax.f32 %v38, -100.0
  %v41 = vmul.f32 %v13, %v35
  %v42 = vmul.f32 %v14, %v36
  %v43 = vsub.f32 1.0, %v13
  %v44 = vsub.f32 1.0, %v14
  %v45 = vmul.f32 %v43, %v39
  %v46 = vmul.f32 %v44, %v40
  %v47 = vadd.f32 %v41, %v45
  %v48 = vadd.f32 %v42, %v46
  %v49 = vsub.f32 0.0, %v47
  %v50 = vsub.f32 0.0, %v48
  %v51 = vadd.f32 %v49, %v50
  %v52 = vrot.slane %v51, 4
  %v53 = vadd.f32 %v51, %v52
  %v54 = vrot.slane %v53, 2
  %v55 = vadd.f32 %v53, %v54
  %v56 = vrot.slane %v55, 1
  %v57 = vadd.f32 %v55, %v56
  %58 = vst [vmem:[%s2] sm:$0x1] %v57
  // Predicated region
  $region10: #{bce_loss_2d.1} parent=0 // pred_check
    _
  $region11: #{bce_loss_2d.1} parent=0 // pred_check_branch
    %60 = sbr.rel (0) target = $region13
  $region12: #{bce_loss_2d.1} parent=0 // pred_region
    _
  $region13: #{bce_loss_2d.1} parent=0 // pred_fallthru
    _
  // Predicated region
  $region14: #{bce_loss_2d.1} parent=0 // pred_check
    _
  $region15: #{bce_loss_2d.1} parent=0 // pred_check_branch
    %62 = sbr.rel (0) target = $region17
  $region16: #{bce_loss_2d.1} parent=0 // pred_region
    _
  $region17: #{bce_loss_2d.1} parent=0 // pred_fallthru
    _

</llo_original>
